<compile_context>
chip_gen: v6e
topology: v6e:2x2x1
jax: 0.10.0
libtpu: 0.0.40
codegen_flags: <defaults>
</compile_context>

<pallas_src>
import jax
import jax.numpy as jnp
from jax.experimental import pallas as pl
from jax.experimental.pallas import tpu as pltpu


def _round_up(x: int, m: int) -> int:
    return ((x + m - 1) // m) * m


def _tpu_caps():
    """Returns (physical VMEM bytes per TensorCore, TensorCores per chip)."""
    phys_vmem = 128 << 20
    num_tc = 1
    try:
        phys_vmem = int(pltpu.get_tpu_info().vmem_capacity_bytes)
    except Exception:
        pass
    try:
        kind = jax.local_devices()[0].device_kind.lower()
        if "v7" in kind or "7x" in kind:
            num_tc = 2
    except Exception:
        pass
    if phys_vmem <= (64 << 20):   # 64 MiB/TC is the v7x signature (2 TCs/chip)
        num_tc = max(num_tc, 2)
    return phys_vmem, num_tc


def _choose_tb(B_pad: int, num_tc: int, tb_cap: int) -> int:
    """Batch tile: big single tile on 1-TC chips, >=2 grid steps on 2-TC chips."""
    tb_cap = max(8, (int(tb_cap) // 8) * 8)
    if num_tc >= 2:
        tb = min(256, tb_cap, B_pad)
        if B_pad >= 16:
            # Guarantee at least 2 "parallel" grid steps so both TCs get work.
            tb = min(tb, _round_up(-(-B_pad // 2), 8))
    else:
        # Serial grid on v5e/v6e: take the largest tile that fits (amortize the
        # ~0.35 us per-step overhead), up to 512 rows.
        tb = min(512, tb_cap, B_pad)
    return max(8, (tb // 8) * 8)


# ---------------------------------------------------------------------------
# Kernels
# ---------------------------------------------------------------------------

def _mlp_kernel_resident(x_ref, w1_ref, b1_ref, w2_ref, b2_ref, o_ref):
    # In-kernel bf16 cast of x (no extra HBM pad/cast pass in the wrapper).
    x = x_ref[...].astype(w1_ref.dtype)
    h = jnp.dot(x, w1_ref[...], preferred_element_type=jnp.float32)
    h = jnp.maximum(h + b1_ref[...], 0.0)                      # bias + ReLU in fp32
    y = jnp.dot(h.astype(w2_ref.dtype), w2_ref[...],
                preferred_element_type=jnp.float32)
    o = o_ref.shape[-1]
    o_ref[...] = (y[:, :o] + b2_ref[...]).astype(o_ref.dtype)  # unpadded-O store


def _mlp_kernel_ktiled(x_ref, w1_ref, b1_ref, w2_ref, b2_ref, o_ref, acc_ref):
    # fc1 accumulated over the K (feature) grid axis; W1 is streamed from HBM.
    k = pl.program_id(1)

    @pl.when(k == 0)
    def _():
        acc_ref[...] = jnp.zeros_like(acc_ref)

    x = x_ref[...].astype(w1_ref.dtype)
    acc_ref[...] += jnp.dot(x, w1_ref[...], preferred_element_type=jnp.float32)

    @pl.when(k == pl.num_programs(1) - 1)
    def _():
        h = jnp.maximum(acc_ref[...] + b1_ref[...], 0.0)
        y = jnp.dot(h.astype(w2_ref.dtype), w2_ref[...],
                    preferred_element_type=jnp.float32)
        o = o_ref.shape[-1]
        o_ref[...] = (y[:, :o] + b2_ref[...]).astype(o_ref.dtype)


# ---------------------------------------------------------------------------
# Host-side wrappers
# ---------------------------------------------------------------------------

def prepare_params(w1, b1, w2, b2, *, compute_dtype=jnp.bfloat16):
    """One-time (hoisted out of the forward path) pad + cast of weights/biases.

    Padded W1 rows / W2 rows / b1 tail are zero, so padded math == unpadded math.
    b2 stays unpadded (1, O) because the output is stored lane-slim.
    """
    F, H = w1.shape
    H2, O = w2.shape
    assert H2 == H
    F_pad, H_pad, O_pad = _round_up(F, 128), _round_up(H, 128), _round_up(O, 128)
    w1p = jnp.zeros((F_pad, H_pad), compute_dtype).at[:F, :H].set(
        w1.astype(compute_dtype))
    b1p = jnp.zeros((1, H_pad), jnp.float32).at[0, :H].set(b1.astype(jnp.float32))
    w2p = jnp.zeros((H_pad, O_pad), compute_dtype).at[:H, :O].set(
        w2.astype(compute_dtype))
    b2p = b2.astype(jnp.float32).reshape(1, O)
    return {"w1p": w1p, "b1p": b1p, "w2p": w2p, "b2p": b2p, "F": F, "H": H, "O": O}


def _pad_x(x, B, B_pad, F, F_pad, compute_dtype, pad_features):
    if not pad_features and B_pad == B:
        return x                                   # fed directly; cast in-kernel
    if not pad_features:
        return jnp.zeros((B_pad, F), x.dtype).at[:B].set(x)
    # K tail MUST be zeroed (garbage x NaN/Inf times zero W1 rows would be NaN);
    # cast to bf16 in the same single pass since we pay the write anyway.
    return jnp.zeros((B_pad, F_pad), compute_dtype).at[:B, :F].set(
        x.astype(compute_dtype))


def _forward_impl(x, params, single_buffer_resident, force_k_tiling):
    w1p, b1p, w2p, b2p = params["w1p"], params["b1p"], params["w2p"], params["b2p"]
    F, H, O = params["F"], params["H"], params["O"]
    F_pad, H_pad = w1p.shape
    O_pad = w2p.shape[1]
    compute_dtype = w1p.dtype
    cd_item = jnp.dtype(compute_dtype).itemsize

    B = int(x.shape[0])
    assert x.shape[1] == F, f"expected {F} features, got {x.shape}"

    phys_vmem, num_tc = _tpu_caps()
    # Generation-aware cap: ~52 MiB on v7x (64 MiB/TC), ~104 MiB on v5e/v6e (128 MiB).
    cap_max = int(min(phys_vmem - (8 << 20), (phys_vmem * 13) // 16))
    slack = 2 << 20

    pad_features = (F != F_pad)
    x_item = cd_item if pad_features else jnp.dtype(x.dtype).itemsize

    resident_bytes = w1p.nbytes + b1p.nbytes + w2p.nbytes + b2p.nbytes
    use_k_tiling = force_k_tiling or (resident_bytes + slack > cap_max // 2)

    resident_mode = pl.Buffered(1) if single_buffer_resident else None
    B_pad = _round_up(B, 8)

    if not use_k_tiling:
        # -------- resident-weights path --------
        per_row = 2 * F_pad * x_item + 2 * O * 4
        tb_cap = (cap_max - resident_bytes - slack) // per_row
        TB = _choose_tb(B_pad, num_tc, tb_cap)
        B_pad = _round_up(B_pad, TB)
        x_in = _pad_x(x, B, B_pad, F, F_pad, compute_dtype, pad_features)

        # Post-Buffered(1) footprint: 1x weights + 2x x tile + 2x out tile.
        footprint = resident_bytes + 2 * TB * F_pad * x_item + 2 * TB * O * 4 + slack
        vmem_limit = int(min(max(footprint, 16 << 20), cap_max))
        flops = 2 * B_pad * (F_pad * H_pad + H_pad * O_pad)
        bytes_accessed = int(x_in.nbytes + resident_bytes + B_pad * O * 4)

        out = pl.pallas_call(
            _mlp_kernel_resident,
            out_shape=jax.ShapeDtypeStruct((B_pad, O), jnp.float32),
            grid=(B_pad // TB,),
            in_specs=[
                pl.BlockSpec((TB, F_pad), lambda i: (i, 0)),      # x: pipelined
                pl.BlockSpec((F_pad, H_pad), lambda i: (0, 0),
                             pipeline_mode=resident_mode),        # W1: resident, 1 buf
                pl.BlockSpec((1, H_pad), lambda i: (0, 0),
                             pipeline_mode=resident_mode),        # b1
                pl.BlockSpec((H_pad, O_pad), lambda i: (0, 0),
                             pipeline_mode=resident_mode),        # W2
                pl.BlockSpec((1, O), lambda i: (0, 0),
                             pipeline_mode=resident_mode),        # b2 (unpadded)
            ],
            out_specs=pl.BlockSpec((TB, O), lambda i: (i, 0)),    # unpadded-O output
            compiler_params=pltpu.CompilerParams(
                dimension_semantics=("parallel",),
                vmem_limit_bytes=vmem_limit),
            cost_estimate=pl.CostEstimate(
                flops=flops, transcendentals=0, bytes_accessed=bytes_accessed),
        )(x_in, w1p, b1p, w2p, b2p)
    else:
        # -------- K-tiled path (streamed W1, fp32 accumulator) --------
        TK = min(F_pad, 512)
        if F_pad % TK != 0:
            TK = 128

        def _kt_fixed(tk):
            return (w2p.nbytes + b1p.nbytes + b2p.nbytes
                    + 2 * tk * H_pad * cd_item + slack)

        while TK > 128 and _kt_fixed(TK) > cap_max:
            TK //= 2

        per_row = 2 * TK * x_item + H_pad * 4 + 2 * O * 4
        tb_cap = (cap_max - _kt_fixed(TK)) // per_row
        TB = _choose_tb(B_pad, num_tc, tb_cap)
        B_pad = _round_up(B_pad, TB)
        x_in = _pad_x(x, B, B_pad, F, F_pad, compute_dtype, pad_features)

        footprint = (_kt_fixed(TK) + 2 * TB * TK * x_item
                     + TB * H_pad * 4 + 2 * TB * O * 4)
        vmem_limit = int(min(max(footprint, 16 << 20), cap_max))
        flops = 2 * B_pad * (F_pad * H_pad + H_pad * O_pad)
        bytes_accessed = int(x_in.nbytes + (B_pad // TB) * w1p.nbytes
                             + w2p.nbytes + b1p.nbytes + b2p.nbytes + B_pad * O * 4)

        out = pl.pallas_call(
            _mlp_kernel_ktiled,
            out_shape=jax.ShapeDtypeStruct((B_pad, O), jnp.float32),
            grid=(B_pad // TB, F_pad // TK),
            in_specs=[
                pl.BlockSpec((TB, TK), lambda i, k: (i, k)),      # x: pipelined
                pl.BlockSpec((TK, H_pad), lambda i, k: (k, 0)),   # W1: streamed
                pl.BlockSpec((1, H_pad), lambda i, k: (0, 0),
                             pipeline_mode=resident_mode),        # b1
                pl.BlockSpec((H_pad, O_pad), lambda i, k: (0, 0),
                             pipeline_mode=resident_mode),        # W2
                pl.BlockSpec((1, O), lambda i, k: (0, 0),
                             pipeline_mode=resident_mode),        # b2 (unpadded)
            ],
            out_specs=pl.BlockSpec((TB, O), lambda i, k: (i, 0)),
            scratch_shapes=[pltpu.VMEM((TB, H_pad), jnp.float32)],
            compiler_params=pltpu.CompilerParams(
                dimension_semantics=("parallel", "arbitrary"),
                vmem_limit_bytes=vmem_limit),
            cost_estimate=pl.CostEstimate(
                flops=flops, transcendentals=0, bytes_accessed=bytes_accessed),
        )(x_in, w1p, b1p, w2p, b2p)

    return out[:B]


def simple_nn_forward(x, params, *, force_k_tiling=False):
    """x: (B, F) fp32; params from prepare_params(). Returns (B, O) fp32."""
    try:
        return _forward_impl(x, params, True, force_k_tiling)
    except Exception:
        # Fallback if this JAX build rejects pl.Buffered(1) on resident operands.
        return _forward_impl(x, params, False, force_k_tiling)


# ---------------------------------------------------------------------------
# Test harness
# ---------------------------------------------------------------------------

def init_params(key, input_size, hidden_size, output_size):
    """nn.Linear-style init: U(-1/sqrt(fan_in), 1/sqrt(fan_in)); weights (in, out)."""
    k1, k2, k3, k4 = jax.random.split(key, 4)
    bound1 = 1.0 / jnp.sqrt(input_size)
    bound2 = 1.0 / jnp.sqrt(hidden_size)
    w1 = jax.random.uniform(k1, (input_size, hidden_size), jnp.float32, -bound1, bound1)
    b1 = jax.random.uniform(k2, (hidden_size,), jnp.float32, -bound1, bound1)
    w2 = jax.random.uniform(k3, (hidden_size, output_size), jnp.float32, -bound2, bound2)
    b2 = jax.random.uniform(k4, (output_size,), jnp.float32, -bound2, bound2)
    return w1, b1, w2, b2


def ref_forward(x, w1, b1, w2, b2):
    """Pure-JAX reference matching the kernel's bf16-input / fp32-accumulate path."""
    xb = x.astype(jnp.bfloat16).astype(jnp.float32)
    w1b = w1.astype(jnp.bfloat16).astype(jnp.float32)
    w2b = w2.astype(jnp.bfloat16).astype(jnp.float32)
    h = jnp.maximum(xb @ w1b + b1, 0.0)
    hb = h.astype(jnp.bfloat16).astype(jnp.float32)
    return hb @ w2b + b2


if __name__ == "__main__":
    batch = 8
    input_size = 16
    hidden_size = 32
    output_size = 2

    key = jax.random.PRNGKey(0)
    k_x, k_p = jax.random.split(key)
    x = jax.random.normal(k_x, (batch, input_size), jnp.float32)
    w1, b1, w2, b2 = init_params(k_p, input_size, hidden_size, output_size)

    # One-time weight prep (hoisted out of the per-forward path).
    params = prepare_params(w1, b1, w2, b2)

    out = jax.block_until_ready(simple_nn_forward(x, params))

    ref = ref_forward(x, w1, b1, w2, b2)
    assert out.shape == (batch, output_size)
    assert jnp.allclose(out, ref, atol=2e-3, rtol=2e-3), (
        f"max abs err = {jnp.max(jnp.abs(out - ref))}")

    # Also exercise the K-tiled (streamed-W1 + accumulator) path used when the
    # resident weights would not fit the VMEM cap (e.g. large F on v7x).
    out_kt = jax.block_until_ready(simple_nn_forward(x, params, force_k_tiling=True))
    assert jnp.allclose(out_kt, ref, atol=2e-3, rtol=2e-3), (
        f"k-tiled max abs err = {jnp.max(jnp.abs(out_kt - ref))}")

    # Sanity vs full-fp32 reference (loose tolerance for bf16 inputs).
    ref_fp32 = jnp.maximum(x @ w1 + b1, 0.0) @ w2 + b2
    assert jnp.allclose(out, ref_fp32, atol=5e-2, rtol=5e-2)

    print("KERNEL_OK")
</pallas_src>

<mosaic_0001>
module attributes {stable_mosaic.version = 11 : i64} {
  func.func @_mlp_kernel_resident(%arg0: i32, %arg1: memref<8x128xbf16, #tpu.memory_space<vmem>>, %arg2: memref<128x128xbf16, #tpu.memory_space<vmem>>, %arg3: memref<1x128xf32, #tpu.memory_space<vmem>>, %arg4: memref<128x128xbf16, #tpu.memory_space<vmem>>, %arg5: memref<1x2xf32, #tpu.memory_space<vmem>>, %arg6: memref<8x2xf32, #tpu.memory_space<vmem>>) attributes {dimension_semantics = [#tpu.dimension_semantics<parallel>], iteration_bounds = array<i64: 1>, scalar_prefetch = 0 : i64, scratch_operands = 0 : i64, tpu.core_type = #tpu.core_type<tc>, window_params = [{transform_indices = @transform_0, window_bounds = array<i64: 8, 128>}, {pipeline_mode = #tpu.pipeline_mode<synchronous>, transform_indices = @transform_1, window_bounds = array<i64: 128, 128>}, {pipeline_mode = #tpu.pipeline_mode<synchronous>, transform_indices = @transform_2, window_bounds = array<i64: 1, 128>}, {pipeline_mode = #tpu.pipeline_mode<synchronous>, transform_indices = @transform_3, window_bounds = array<i64: 128, 128>}, {pipeline_mode = #tpu.pipeline_mode<synchronous>, transform_indices = @transform_4, window_bounds = array<i64: 1, 2>}, {transform_indices = @transform_5, window_bounds = array<i64: 8, 2>}]} {
    %c0 = arith.constant 0 : index
    %c0_0 = arith.constant 0 : index
    %0 = vector.load %arg1[%c0, %c0_0] : memref<8x128xbf16, #tpu.memory_space<vmem>>, vector<8x128xbf16>
    %c0_1 = arith.constant 0 : index
    %c0_2 = arith.constant 0 : index
    %1 = vector.load %arg2[%c0_1, %c0_2] : memref<128x128xbf16, #tpu.memory_space<vmem>>, vector<128x128xbf16>
    %cst = arith.constant dense<0.000000e+00> : vector<8x128xf32>
    %2 = tpu.matmul %0, %1, %cst {dimension_numbers = #tpu.dot_dimension_numbers<[1], [0], [0], [1], [0, 0, 1, 1], [], []>} : vector<8x128xbf16>, vector<128x128xbf16>, vector<8x128xf32> -> vector<8x128xf32>
    %c0_3 = arith.constant 0 : index
    %c0_4 = arith.constant 0 : index
    %3 = vector.load %arg3[%c0_3, %c0_4] : memref<1x128xf32, #tpu.memory_space<vmem>>, vector<1x128xf32>
    %4 = vector.broadcast %3 : vector<1x128xf32> to vector<8x128xf32>
    %5 = arith.addf %2, %4 : vector<8x128xf32>
    %cst_5 = arith.constant 0.000000e+00 : f32
    %6 = vector.broadcast %cst_5 : f32 to vector<8x128xf32>
    %7 = arith.maximumf %5, %6 : vector<8x128xf32>
    %8 = arith.truncf %7 : vector<8x128xf32> to vector<8x128xbf16>
    %c0_6 = arith.constant 0 : index
    %c0_7 = arith.constant 0 : index
    %9 = vector.load %arg4[%c0_6, %c0_7] : memref<128x128xbf16, #tpu.memory_space<vmem>>, vector<128x128xbf16>
    %cst_8 = arith.constant dense<0.000000e+00> : vector<8x128xf32>
    %10 = tpu.matmul %8, %9, %cst_8 {dimension_numbers = #tpu.dot_dimension_numbers<[1], [0], [0], [1], [0, 0, 1, 1], [], []>} : vector<8x128xbf16>, vector<128x128xbf16>, vector<8x128xf32> -> vector<8x128xf32>
    %11 = vector.extract_strided_slice %10 {offsets = [0, 0], sizes = [8, 2], strides = [1, 1]} : vector<8x128xf32> to vector<8x2xf32>
    %c0_9 = arith.constant 0 : index
    %c0_10 = arith.constant 0 : index
    %12 = vector.load %arg5[%c0_9, %c0_10] : memref<1x2xf32, #tpu.memory_space<vmem>>, vector<1x2xf32>
    %13 = vector.broadcast %12 : vector<1x2xf32> to vector<8x2xf32>
    %14 = arith.addf %11, %13 : vector<8x2xf32>
    %c0_11 = arith.constant 0 : index
    %c0_12 = arith.constant 0 : index
    %15 = vector.load %arg6[%c0_11, %c0_12] : memref<8x2xf32, #tpu.memory_space<vmem>>, vector<8x2xf32>
    tpu.vector_store %arg6[%c0_11, %c0_12], %14 {strides = array<i32>} : memref<8x2xf32, #tpu.memory_space<vmem>>, vector<8x2xf32>,
    return
  }
  func.func @transform_0(%arg0: i32) -> (i32, i32) {
    %c0_i32 = arith.constant 0 : i32
    %c0_i32_0 = arith.constant 0 : i32
    return %arg0, %c0_i32 : i32, i32
  }
  func.func @transform_1(%arg0: i32) -> (i32, i32) {
    %c0_i32 = arith.constant 0 : i32
    %c0_i32_0 = arith.constant 0 : i32
    %c0_i32_1 = arith.constant 0 : i32
    return %c0_i32, %c0_i32_0 : i32, i32
  }
  func.func @transform_2(%arg0: i32) -> (i32, i32) {
    %c0_i32 = arith.constant 0 : i32
    %c0_i32_0 = arith.constant 0 : i32
    %c0_i32_1 = arith.constant 0 : i32
    return %c0_i32, %c0_i32_0 : i32, i32
  }
  func.func @transform_3(%arg0: i32) -> (i32, i32) {
    %c0_i32 = arith.constant 0 : i32
    %c0_i32_0 = arith.constant 0 : i32
    %c0_i32_1 = arith.constant 0 : i32
    return %c0_i32, %c0_i32_0 : i32, i32
  }
  func.func @transform_4(%arg0: i32) -> (i32, i32) {
    %c0_i32 = arith.constant 0 : i32
    %c0_i32_0 = arith.constant 0 : i32
    %c0_i32_1 = arith.constant 0 : i32
    return %c0_i32, %c0_i32_0 : i32, i32
  }
  func.func @transform_5(%arg0: i32) -> (i32, i32) {
    %c0_i32 = arith.constant 0 : i32
    %c0_i32_0 = arith.constant 0 : i32
    return %arg0, %c0_i32 : i32, i32
  }
}

module attributes {stable_mosaic.version = 11 : i64} {
  func.func @_mlp_kernel_resident(%arg0: i32, %arg1: memref<8x128xbf16, #tpu.memory_space<vmem>>, %arg2: memref<128x128xbf16, #tpu.memory_space<vmem>>, %arg3: memref<1x128xf32, #tpu.memory_space<vmem>>, %arg4: memref<128x128xbf16, #tpu.memory_space<vmem>>, %arg5: memref<1x2xf32, #tpu.memory_space<vmem>>, %arg6: memref<8x2xf32, #tpu.memory_space<vmem>>) attributes {dimension_semantics = [#tpu.dimension_semantics<parallel>], iteration_bounds = array<i64: 1>, scalar_prefetch = 0 : i64, scratch_operands = 0 : i64, tpu.core_type = #tpu.core_type<tc>, window_params = [{transform_indices = @transform_0, window_bounds = array<i64: 8, 128>}, {pipeline_mode = #tpu.pipeline_mode<synchronous>, transform_indices = @transform_1, window_bounds = array<i64: 128, 128>}, {pipeline_mode = #tpu.pipeline_mode<synchronous>, transform_indices = @transform_2, window_bounds = array<i64: 1, 128>}, {pipeline_mode = #tpu.pipeline_mode<synchronous>, transform_indices = @transform_3, window_bounds = array<i64: 128, 128>}, {pipeline_mode = #tpu.pipeline_mode<synchronous>, transform_indices = @transform_4, window_bounds = array<i64: 1, 2>}, {transform_indices = @transform_5, window_bounds = array<i64: 8, 2>}]} {
    %c0 = arith.constant 0 : index
    %c0_0 = arith.constant 0 : index
    %0 = vector.load %arg1[%c0, %c0_0] : memref<8x128xbf16, #tpu.memory_space<vmem>>, vector<8x128xbf16>
    %c0_1 = arith.constant 0 : index
    %c0_2 = arith.constant 0 : index
    %1 = vector.load %arg2[%c0_1, %c0_2] : memref<128x128xbf16, #tpu.memory_space<vmem>>, vector<128x128xbf16>
    %cst = arith.constant dense<0.000000e+00> : vector<8x128xf32>
    %2 = tpu.matmul %0, %1, %cst {dimension_numbers = #tpu.dot_dimension_numbers<[1], [0], [0], [1], [0, 0, 1, 1], [], []>} : vector<8x128xbf16>, vector<128x128xbf16>, vector<8x128xf32> -> vector<8x128xf32>
    %c0_3 = arith.constant 0 : index
    %c0_4 = arith.constant 0 : index
    %3 = vector.load %arg3[%c0_3, %c0_4] : memref<1x128xf32, #tpu.memory_space<vmem>>, vector<1x128xf32>
    %4 = vector.broadcast %3 : vector<1x128xf32> to vector<8x128xf32>
    %5 = arith.addf %2, %4 : vector<8x128xf32>
    %cst_5 = arith.constant 0.000000e+00 : f32
    %6 = vector.broadcast %cst_5 : f32 to vector<8x128xf32>
    %7 = arith.maximumf %5, %6 : vector<8x128xf32>
    %8 = arith.truncf %7 : vector<8x128xf32> to vector<8x128xbf16>
    %c0_6 = arith.constant 0 : index
    %c0_7 = arith.constant 0 : index
    %9 = vector.load %arg4[%c0_6, %c0_7] : memref<128x128xbf16, #tpu.memory_space<vmem>>, vector<128x128xbf16>
    %cst_8 = arith.constant dense<0.000000e+00> : vector<8x128xf32>
    %10 = tpu.matmul %8, %9, %cst_8 {dimension_numbers = #tpu.dot_dimension_numbers<[1], [0], [0], [1], [0, 0, 1, 1], [], []>} : vector<8x128xbf16>, vector<128x128xbf16>, vector<8x128xf32> -> vector<8x128xf32>
    %11 = vector.extract_strided_slice %10 {offsets = [0, 0], sizes = [8, 2], strides = [1, 1]} : vector<8x128xf32> to vector<8x2xf32>
    %c0_9 = arith.constant 0 : index
    %c0_10 = arith.constant 0 : index
    %12 = vector.load %arg5[%c0_9, %c0_10] : memref<1x2xf32, #tpu.memory_space<vmem>>, vector<1x2xf32>
    %13 = vector.broadcast %12 : vector<1x2xf32> to vector<8x2xf32>
    %14 = arith.addf %11, %13 : vector<8x2xf32>
    %c0_11 = arith.constant 0 : index
    %c0_12 = arith.constant 0 : index
    %15 = vector.load %arg6[%c0_11, %c0_12] : memref<8x2xf32, #tpu.memory_space<vmem>>, vector<8x2xf32>
    tpu.vector_store %arg6[%c0_11, %c0_12], %14 {strides = array<i32>} : memref<8x2xf32, #tpu.memory_space<vmem>>, vector<8x2xf32>,
    return
  }
  func.func @transform_0(%arg0: i32) -> (i32, i32) {
    %c0_i32 = arith.constant 0 : i32
    %c0_i32_0 = arith.constant 0 : i32
    return %arg0, %c0_i32 : i32, i32
  }
  func.func @transform_1(%arg0: i32) -> (i32, i32) {
    %c0_i32 = arith.constant 0 : i32
    %c0_i32_0 = arith.constant 0 : i32
    %c0_i32_1 = arith.constant 0 : i32
    return %c0_i32, %c0_i32_0 : i32, i32
  }
  func.func @transform_2(%arg0: i32) -> (i32, i32) {
    %c0_i32 = arith.constant 0 : i32
    %c0_i32_0 = arith.constant 0 : i32
    %c0_i32_1 = arith.constant 0 : i32
    return %c0_i32, %c0_i32_0 : i32, i32
  }
  func.func @transform_3(%arg0: i32) -> (i32, i32) {
    %c0_i32 = arith.constant 0 : i32
    %c0_i32_0 = arith.constant 0 : i32
    %c0_i32_1 = arith.constant 0 : i32
    return %c0_i32, %c0_i32_0 : i32, i32
  }
  func.func @transform_4(%arg0: i32) -> (i32, i32) {
    %c0_i32 = arith.constant 0 : i32
    %c0_i32_0 = arith.constant 0 : i32
    %c0_i32_1 = arith.constant 0 : i32
    return %c0_i32, %c0_i32_0 : i32, i32
  }
  func.func @transform_5(%arg0: i32) -> (i32, i32) {
    %c0_i32 = arith.constant 0 : i32
    %c0_i32_0 = arith.constant 0 : i32
    return %arg0, %c0_i32 : i32, i32
  }
}

</mosaic_0001>

<llo_original>
// kernel: tpu_custom_call.1
$region0: #{tpu_custom_call.1}
  #allocation0 [shape = 'u32[]', space=smem, size = 0x4, offset = 0x4, fixed_abs, tag = 'smem constant byte address 0x4 - core index']
  #allocation1 [shape = 'u32[144,128]{1,0:T(1,128)}', space=vmem, size = 0x12000, scoped, tag = 'internal scratch']
  %s0 = inlined_call_operand.hbm [shape: bf16[8,128], index: 0, kind: input, shape index: {}]
  %s1 = inlined_call_operand.hbm [shape: bf16[128,128], index: 1, kind: input, shape index: {}]
  %s2 = inlined_call_operand.vmem [shape: f32[1,128], index: 2, kind: input, shape index: {}]
  %s3 = inlined_call_operand.hbm [shape: bf16[128,128], index: 3, kind: input, shape index: {}]
  %s4 = inlined_call_operand.vmem [shape: f32[1,2], index: 4, kind: input, shape index: {}]
  %s5 = inlined_call_operand.vmem [shape: f32[8,2], index: 5, kind: output, shape index: {}]
  %s6 = sld [smem:[#allocation0]]
  $region42: #{tpu_custom_call.1} parent=0
    _
  %s8 = ssub.s32 1, %s6
  %s9 = scalar_select 0, %s8, %s6
  $region1: #{tpu_custom_call.1} parent=0
    #allocation2 [shape = 'u8[2048]{0}', space=vmem, size = 0x800, scoped, tag = 'input window, operand 0, single buffered']
    #allocation3 [shape = 's32[1]{0}', space=sflag, size = 0x4, scoped, tag = 'scoped memory for tpu_custom_call.1']
    #allocation4 [shape = 'u8[32768]{0}', space=vmem, size = 0x8000, scoped, tag = 'input window, operand 1, single buffered']
    #allocation5 [shape = 's32[1]{0}', space=sflag, size = 0x4, scoped, tag = 'scoped memory for tpu_custom_call.1']
    #allocation6 [shape = 'u8[32768]{0}', space=vmem, size = 0x8000, scoped, tag = 'input window, operand 3, single buffered']
    %10 = vsyncpa [#allocation3], 0
    %11 = vsyncpa [#allocation5], 0
    // Predicated region
    $region2: #{tpu_custom_call.1} parent=1 // pred_check
      _
    $region3: #{tpu_custom_call.1} parent=1 // pred_check_branch
      %13 = sbr.rel (0) target = $region5
    $region4: #{tpu_custom_call.1} parent=1 // pred_region
      %s15 = ssub.s32 64, 64
      %16 = vsyncadd [#allocation3], %s15
      %s18 = sshll.u32 [#allocation2], 4
      %s19 = int_to_ptr.vmem [resolvable:$true] %s18
      %21 = dma.hbm_to_vmem [thread:$0]  %s0, 64, %s19, [#allocation3]
    $region5: #{tpu_custom_call.1} parent=1 // pred_fallthru
      _
    // Predicated region
    $region6: #{tpu_custom_call.1} parent=1 // pred_check
      _
    $region7: #{tpu_custom_call.1} parent=1 // pred_check_branch
      %23 = sbr.rel (0) target = $region9
    $region8: #{tpu_custom_call.1} parent=1 // pred_region
      %s25 = ssub.s32 1024, 1024
      %26 = vsyncadd [#allocation5], %s25
      %s27 = sshll.u32 [#allocation4], 4
      %s28 = int_to_ptr.vmem [resolvable:$true] %s27
      %33 = dma.hbm_to_vmem [thread:$0]  %s1, 1024, %s28, [#allocation5], 64, 64, 4
    $region9: #{tpu_custom_call.1} parent=1 // pred_fallthru
      _
    // Predicated region
    $region10: #{tpu_custom_call.1} parent=1 // pred_check
      _
    $region11: #{tpu_custom_call.1} parent=1 // pred_check_branch
      %35 = sbr.rel (0) target = $region13
    $region12: #{tpu_custom_call.1} parent=1 // pred_region
      _
    $region13: #{tpu_custom_call.1} parent=1 // pred_fallthru
      _
    // Predicated region
    $region14: #{tpu_custom_call.1} parent=1 // pred_check
      _
    $region15: #{tpu_custom_call.1} parent=1 // pred_check_branch
      %37 = sbr.rel (0) target = $region17
    $region16: #{tpu_custom_call.1} parent=1 // pred_region
      %s39 = ssub.s32 1024, 1024
      %40 = vsyncadd [#allocation5], %s39
      %s41 = sshll.u32 [#allocation6], 4
      %s42 = int_to_ptr.vmem [resolvable:$true] %s41
      %47 = dma.hbm_to_vmem [thread:$0]  %s3, 1024, %s42, [#allocation5], 64, 64, 4
    $region17: #{tpu_custom_call.1} parent=1 // pred_fallthru
      _
    // Predicated region
    $region18: #{tpu_custom_call.1} parent=1 // pred_check
      _
    $region19: #{tpu_custom_call.1} parent=1 // pred_check_branch
      %49 = sbr.rel (0) target = $region21
    $region20: #{tpu_custom_call.1} parent=1 // pred_region
      _
    $region21: #{tpu_custom_call.1} parent=1 // pred_fallthru
      _
    // Predicated region
    $region22: #{tpu_custom_call.1} parent=1 // pred_check
      _
    $region23: #{tpu_custom_call.1} parent=1 // pred_check_branch
      %51 = sbr.rel (0) target = $region25
    $region24: #{tpu_custom_call.1} parent=1 // pred_region
      %52 = dma.done [#allocation3], 64
    $region25: #{tpu_custom_call.1} parent=1 // pred_fallthru
      _
    // Predicated region
    $region26: #{tpu_custom_call.1} parent=1 // pred_check
      _
    $region27: #{tpu_custom_call.1} parent=1 // pred_check_branch
      %54 = sbr.rel (0) target = $region29
    $region28: #{tpu_custom_call.1} parent=1 // pred_region
      %55 = dma.done [#allocation5], 1024
    $region29: #{tpu_custom_call.1} parent=1 // pred_fallthru
      _
    // Predicated region
    $region30: #{tpu_custom_call.1} parent=1 // pred_check
      _
    $region31: #{tpu_custom_call.1} parent=1 // pred_check_branch
      %57 = sbr.rel (0) target = $region33
    $region32: #{tpu_custom_call.1} parent=1 // pred_region
      %58 = dma.done [#allocation5], 1024
    $region33: #{tpu_custom_call.1} parent=1 // pred_fallthru
      _
    %v60 = vld [vmem:[#allocation2] sm:$0xf]
    %v61 = vld [vmem:[#allocation4] sm:$0xf]
    %v62 = vld [vmem:[#allocation4 + $0x4] sm:$0xf]
    %v63 = vld [vmem:[#allocation4 + $0x8] sm:$0xf]
    %v64 = vld [vmem:[#allocation4 + $0xc] sm:$0xf]
    %v65 = vld [vmem:[#allocation4 + $0x10] sm:$0xf]
    %v66 = vld [vmem:[#allocation4 + $0x14] sm:$0xf]
    %v67 = vld [vmem:[#allocation4 + $0x18] sm:$0xf]
    %v68 = vld [vmem:[#allocation4 + $0x1c] sm:$0xf]
    %v69 = vld [vmem:[#allocation4 + $0x20] sm:$0xf]
    %v70 = vld [vmem:[#allocation4 + $0x24] sm:$0xf]
    %v71 = vld [vmem:[#allocation4 + $0x28] sm:$0xf]
    %v72 = vld [vmem:[#allocation4 + $0x2c] sm:$0xf]
    %v73 = vld [vmem:[#allocation4 + $0x30] sm:$0xf]
    %v74 = vld [vmem:[#allocation4 + $0x34] sm:$0xf]
    %v75 = vld [vmem:[#allocation4 + $0x38] sm:$0xf]
    %v76 = vld [vmem:[#allocation4 + $0x3c] sm:$0xf]
    %v77 = vld [vmem:[%s2] sm:$0x1]
    %v79 = vlaneseq
    %v80 = vshrl.u32 %v79, 7
    %v81 = vsub.s32 0, %v80
    %v82 = vrot.slane %v77, %v81
    %v100 = vunpack.c.l.b16 %v61
    %v101 = vunpack.c.l.b16 %v62
    %v102 = vunpack.c.l.b16 %v63
    %v103 = vunpack.c.l.b16 %v64
    %v104 = vunpack.c.l.b16 %v65
    %v105 = vunpack.c.l.b16 %v66
    %v106 = vunpack.c.l.b16 %v67
    %v107 = vunpack.c.l.b16 %v68
    %v108 = vunpack.c.l.b16 %v69
    %v109 = vunpack.c.l.b16 %v70
    %v110 = vunpack.c.l.b16 %v71
    %v111 = vunpack.c.l.b16 %v72
    %v112 = vunpack.c.l.b16 %v73
    %v113 = vunpack.c.l.b16 %v74
    %v114 = vunpack.c.l.b16 %v75
    %v115 = vunpack.c.l.b16 %v76
    %v116 = vpack.c.b16 %v101, %v100
    %v117 = vpack.c.b16 %v103, %v102
    %v118 = vpack.c.b16 %v105, %v104
    %v119 = vpack.c.b16 %v107, %v106
    %v120 = vpack.c.b16 %v109, %v108
    %v121 = vpack.c.b16 %v111, %v110
    %v122 = vpack.c.b16 %v113, %v112
    %v123 = vpack.c.b16 %v115, %v114
    %132 = vmatprep.subr.bf16.mxu0 0
    %133 = vmatpush1.bf16.msra.mxu0 %v123
    %134 = vmatprep.subr.bf16.mxu0 0
    %135 = vmatpush1.bf16.msra.mxu0 %v122
    %136 = vmatprep.subr.bf16.mxu0 0
    %137 = vmatpush1.bf16.msra.mxu0 %v121
    %138 = vmatprep.subr.bf16.mxu0 0
    %139 = vmatpush1.bf16.msra.mxu0 %v120
    %140 = vmatprep.subr.bf16.mxu0 0
    %141 = vmatpush1.bf16.msra.mxu0 %v119
    %142 = vmatprep.subr.bf16.mxu0 0
    %143 = vmatpush1.bf16.msra.mxu0 %v118
    %144 = vmatprep.subr.bf16.mxu0 0
    %145 = vmatpush1.bf16.msra.mxu0 %v117
    %146 = vmatprep.subr.bf16.mxu0 0
    %147 = vmatpush1.bf16.msra.mxu0 %v116
    %148 = vmatprep.subr.bf16.mxu0 0
    %149 = vmatpush2.bf16.msra.mxu0 0
    %150 = vmatprep.subr.bf16.mxu0 0
    %151 = vmatpush2.bf16.msra.mxu0 0
    %152 = vmatprep.subr.bf16.mxu0 0
    %153 = vmatpush2.bf16.msra.mxu0 0
    %154 = vmatprep.subr.bf16.mxu0 0
    %155 = vmatpush2.bf16.msra.mxu0 0
    %156 = vmatprep.subr.bf16.mxu0 0
    %157 = vmatpush2.bf16.msra.mxu0 0
    %158 = vmatprep.subr.bf16.mxu0 0
    %159 = vmatpush2.bf16.msra.mxu0 0
    %160 = vmatprep.subr.bf16.mxu0 0
    %161 = vmatpush2.bf16.msra.mxu0 0
    %162 = vmatprep.subr.bf16.mxu0 0
    %163 = vmatpush2.bf16.msra.mxu0 0
    %164 = vmatprep.mubr.bf16.mxu0 0
    %165 = vmatmul.mubr.bf16.gmra.mxu0 %v60
    %v166 = vpop.f32.mrf.mxu0
    %v167 = vadd.f32 %v82, %v166
    %v168 = vpop.f32.mrf.mxu0
    %v169 = vpop.f32.mrf.mxu0
    %v170 = vpop.f32.mrf.mxu0
    %171 = vdwg.mxu0
    %v172 = vmax.f32 %v167, 0.0
    %v173 = vpack.c.bf16 %v172, %v172
    %v174 = vld [vmem:[#allocation6] sm:$0xf]
    %v175 = vld [vmem:[#allocation6 + $0x4] sm:$0xf]
    %v176 = vld [vmem:[#allocation6 + $0x8] sm:$0xf]
    %v177 = vld [vmem:[#allocation6 + $0xc] sm:$0xf]
    %v178 = vld [vmem:[#allocation6 + $0x10] sm:$0xf]
    %v179 = vld [vmem:[#allocation6 + $0x14] sm:$0xf]
    %v180 = vld [vmem:[#allocation6 + $0x18] sm:$0xf]
    %v181 = vld [vmem:[#allocation6 + $0x1c] sm:$0xf]
    %v182 = vld [vmem:[#allocation6 + $0x20] sm:$0xf]
    %v183 = vld [vmem:[#allocation6 + $0x24] sm:$0xf]
    %v184 = vld [vmem:[#allocation6 + $0x28] sm:$0xf]
    %v185 = vld [vmem:[#allocation6 + $0x2c] sm:$0xf]
    %v186 = vld [vmem:[#allocation6 + $0x30] sm:$0xf]
    %v187 = vld [vmem:[#allocation6 + $0x34] sm:$0xf]
    %v188 = vld [vmem:[#allocation6 + $0x38] sm:$0xf]
    %v189 = vld [vmem:[#allocation6 + $0x3c] sm:$0xf]
    %v206 = vunpack.c.l.b16 %v174
    %v207 = vunpack.c.l.b16 %v175
    %v208 = vunpack.c.l.b16 %v176
    %v209 = vunpack.c.l.b16 %v177
    %v210 = vunpack.c.l.b16 %v178
    %v211 = vunpack.c.l.b16 %v179
    %v212 = vunpack.c.l.b16 %v180
    %v213 = vunpack.c.l.b16 %v181
    %v214 = vunpack.c.l.b16 %v182
    %v215 = vunpack.c.l.b16 %v183
    %v216 = vunpack.c.l.b16 %v184
    %v217 = vunpack.c.l.b16 %v185
    %v218 = vunpack.c.l.b16 %v186
    %v219 = vunpack.c.l.b16 %v187
    %v220 = vunpack.c.l.b16 %v188
    %v221 = vunpack.c.l.b16 %v189
    %v222 = vpack.c.b16 %v207, %v206
    %v223 = vpack.c.b16 %v209, %v208
    %v224 = vpack.c.b16 %v211, %v210
    %v225 = vpack.c.b16 %v213, %v212
    %v226 = vpack.c.b16 %v215, %v214
    %v227 = vpack.c.b16 %v217, %v216
    %v228 = vpack.c.b16 %v219, %v218
    %v229 = vpack.c.b16 %v221, %v220
    %238 = vmatprep.subr.bf16.mxu0 0
    %239 = vmatpush1.bf16.msra.mxu0 %v229
    %240 = vmatprep.subr.bf16.mxu0 0
    %241 = vmatpush1.bf16.msra.mxu0 %v228
    %242 = vmatprep.subr.bf16.mxu0 0
    %243 = vmatpush1.bf16.msra.mxu0 %v227
    %244 = vmatprep.subr.bf16.mxu0 0
    %245 = vmatpush1.bf16.msra.mxu0 %v226
    %246 = vmatprep.subr.bf16.mxu0 0
    %247 = vmatpush1.bf16.msra.mxu0 %v225
    %248 = vmatprep.subr.bf16.mxu0 0
    %249 = vmatpush1.bf16.msra.mxu0 %v224
    %250 = vmatprep.subr.bf16.mxu0 0
    %251 = vmatpush1.bf16.msra.mxu0 %v223
    %252 = vmatprep.subr.bf16.mxu0 0
    %253 = vmatpush1.bf16.msra.mxu0 %v222
    %254 = vmatprep.subr.bf16.mxu0 0
    %255 = vmatpush2.bf16.msra.mxu0 0
    %256 = vmatprep.subr.bf16.mxu0 0
    %257 = vmatpush2.bf16.msra.mxu0 0
    %258 = vmatprep.subr.bf16.mxu0 0
    %259 = vmatpush2.bf16.msra.mxu0 0
    %260 = vmatprep.subr.bf16.mxu0 0
    %261 = vmatpush2.bf16.msra.mxu0 0
    %262 = vmatprep.subr.bf16.mxu0 0
    %263 = vmatpush2.bf16.msra.mxu0 0
    %264 = vmatprep.subr.bf16.mxu0 0
    %265 = vmatpush2.bf16.msra.mxu0 0
    %266 = vmatprep.subr.bf16.mxu0 0
    %267 = vmatpush2.bf16.msra.mxu0 0
    %268 = vmatprep.subr.bf16.mxu0 0
    %269 = vmatpush2.bf16.msra.mxu0 0
    %270 = vmatprep.mubr.bf16.mxu0 0
    %271 = vmatmul.mubr.bf16.gmra.mxu0 %v173
    %v272 = vpop.f32.mrf.mxu0
    %v273 = vadd.f32 0.0, %v272
    %v274 = vpop.f32.mrf.mxu0
    %v275 = vpop.f32.mrf.mxu0
    %v276 = vpop.f32.mrf.mxu0
    %277 = vdwg.mxu0
    %v278 = vld [vmem:[%s4] sm:$0x1]
    %v280 = vlaneseq
    %v281 = vshrl.u32 %v280, 7
    %v282 = vsub.s32 0, %v281
    %v283 = vrot.slane %v278, %v282
    %v285 = vadd.f32 %v273, %v283
    %vm286 = vcmask 15360
    %287 = vst.msk [vmem:[%s5] sm:$0xff] %vm286, %v285
    // Predicated region
    $region34: #{tpu_custom_call.1} parent=1 // pred_check
      _
    $region35: #{tpu_custom_call.1} parent=1 // pred_check_branch
      %289 = sbr.rel (0) target = $region37
    $region36: #{tpu_custom_call.1} parent=1 // pred_region
      _
    $region37: #{tpu_custom_call.1} parent=1 // pred_fallthru
      _
    // Predicated region
    $region38: #{tpu_custom_call.1} parent=1 // pred_check
      _
    $region39: #{tpu_custom_call.1} parent=1 // pred_check_branch
      %291 = sbr.rel (0) target = $region41
    $region40: #{tpu_custom_call.1} parent=1 // pred_region
      _
    $region41: #{tpu_custom_call.1} parent=1 // pred_fallthru
      _
    %292 = vsyncpa [#allocation3], 1
    %293 = vsyncpa [#allocation5], 1

// kernel: tpu_custom_call.1
$region0: #{tpu_custom_call.1}
  #allocation0 [shape = 'u32[]', space=smem, size = 0x4, offset = 0x4, fixed_abs, tag = 'smem constant byte address 0x4 - core index']
  #allocation1 [shape = 'u32[144,128]{1,0:T(1,128)}', space=vmem, size = 0x12000, scoped, tag = 'internal scratch']
  %s0 = inlined_call_operand.hbm [shape: bf16[8,128], index: 0, kind: input, shape index: {}]
  %s1 = inlined_call_operand.hbm [shape: bf16[128,128], index: 1, kind: input, shape index: {}]
  %s2 = inlined_call_operand.vmem [shape: f32[1,128], index: 2, kind: input, shape index: {}]
  %s3 = inlined_call_operand.hbm [shape: bf16[128,128], index: 3, kind: input, shape index: {}]
  %s4 = inlined_call_operand.vmem [shape: f32[1,2], index: 4, kind: input, shape index: {}]
  %s5 = inlined_call_operand.vmem [shape: f32[8,2], index: 5, kind: output, shape index: {}]
  %s6 = sld [smem:[#allocation0]]
  $region42: #{tpu_custom_call.1} parent=0
    _
  %s8 = ssub.s32 1, %s6
  %s9 = scalar_select 0, %s8, %s6
  $region1: #{tpu_custom_call.1} parent=0
    #allocation2 [shape = 'u8[2048]{0}', space=vmem, size = 0x800, scoped, tag = 'input window, operand 0, single buffered']
    #allocation3 [shape = 's32[1]{0}', space=sflag, size = 0x4, scoped, tag = 'scoped memory for tpu_custom_call.1']
    #allocation4 [shape = 'u8[32768]{0}', space=vmem, size = 0x8000, scoped, tag = 'input window, operand 1, single buffered']
    #allocation5 [shape = 's32[1]{0}', space=sflag, size = 0x4, scoped, tag = 'scoped memory for tpu_custom_call.1']
    #allocation6 [shape = 'u8[32768]{0}', space=vmem, size = 0x8000, scoped, tag = 'input window, operand 3, single buffered']
    %10 = vsyncpa [#allocation3], 0
    %11 = vsyncpa [#allocation5], 0
    // Predicated region
    $region2: #{tpu_custom_call.1} parent=1 // pred_check
      _
    $region3: #{tpu_custom_call.1} parent=1 // pred_check_branch
      %13 = sbr.rel (0) target = $region5
    $region4: #{tpu_custom_call.1} parent=1 // pred_region
      %s15 = ssub.s32 64, 64
      %16 = vsyncadd [#allocation3], %s15
      %s18 = sshll.u32 [#allocation2], 4
      %s19 = int_to_ptr.vmem [resolvable:$true] %s18
      %21 = dma.hbm_to_vmem [thread:$0]  %s0, 64, %s19, [#allocation3]
    $region5: #{tpu_custom_call.1} parent=1 // pred_fallthru
      _
    // Predicated region
    $region6: #{tpu_custom_call.1} parent=1 // pred_check
      _
    $region7: #{tpu_custom_call.1} parent=1 // pred_check_branch
      %23 = sbr.rel (0) target = $region9
    $region8: #{tpu_custom_call.1} parent=1 // pred_region
      %s25 = ssub.s32 1024, 1024
      %26 = vsyncadd [#allocation5], %s25
      %s27 = sshll.u32 [#allocation4], 4
      %s28 = int_to_ptr.vmem [resolvable:$true] %s27
      %33 = dma.hbm_to_vmem [thread:$0]  %s1, 1024, %s28, [#allocation5], 64, 64, 4
    $region9: #{tpu_custom_call.1} parent=1 // pred_fallthru
      _
    // Predicated region
    $region10: #{tpu_custom_call.1} parent=1 // pred_check
      _
    $region11: #{tpu_custom_call.1} parent=1 // pred_check_branch
      %35 = sbr.rel (0) target = $region13
    $region12: #{tpu_custom_call.1} parent=1 // pred_region
      _
    $region13: #{tpu_custom_call.1} parent=1 // pred_fallthru
      _
    // Predicated region
    $region14: #{tpu_custom_call.1} parent=1 // pred_check
      _
    $region15: #{tpu_custom_call.1} parent=1 // pred_check_branch
      %37 = sbr.rel (0) target = $region17
    $region16: #{tpu_custom_call.1} parent=1 // pred_region
      %s39 = ssub.s32 1024, 1024
      %40 = vsyncadd [#allocation5], %s39
      %s41 = sshll.u32 [#allocation6], 4
      %s42 = int_to_ptr.vmem [resolvable:$true] %s41
      %47 = dma.hbm_to_vmem [thread:$0]  %s3, 1024, %s42, [#allocation5], 64, 64, 4
    $region17: #{tpu_custom_call.1} parent=1 // pred_fallthru
      _
    // Predicated region
    $region18: #{tpu_custom_call.1} parent=1 // pred_check
      _
    $region19: #{tpu_custom_call.1} parent=1 // pred_check_branch
      %49 = sbr.rel (0) target = $region21
    $region20: #{tpu_custom_call.1} parent=1 // pred_region
      _
    $region21: #{tpu_custom_call.1} parent=1 // pred_fallthru
      _
    // Predicated region
    $region22: #{tpu_custom_call.1} parent=1 // pred_check
      _
    $region23: #{tpu_custom_call.1} parent=1 // pred_check_branch
      %51 = sbr.rel (0) target = $region25
    $region24: #{tpu_custom_call.1} parent=1 // pred_region
      %52 = dma.done [#allocation3], 64
    $region25: #{tpu_custom_call.1} parent=1 // pred_fallthru
      _
    // Predicated region
    $region26: #{tpu_custom_call.1} parent=1 // pred_check
      _
    $region27: #{tpu_custom_call.1} parent=1 // pred_check_branch
      %54 = sbr.rel (0) target = $region29
    $region28: #{tpu_custom_call.1} parent=1 // pred_region
      %55 = dma.done [#allocation5], 1024
    $region29: #{tpu_custom_call.1} parent=1 // pred_fallthru
      _
    // Predicated region
    $region30: #{tpu_custom_call.1} parent=1 // pred_check
      _
    $region31: #{tpu_custom_call.1} parent=1 // pred_check_branch
      %57 = sbr.rel (0) target = $region33
    $region32: #{tpu_custom_call.1} parent=1 // pred_region
      %58 = dma.done [#allocation5], 1024
    $region33: #{tpu_custom_call.1} parent=1 // pred_fallthru
      _
    %v60 = vld [vmem:[#allocation2] sm:$0xf]
    %v61 = vld [vmem:[#allocation4] sm:$0xf]
    %v62 = vld [vmem:[#allocation4 + $0x4] sm:$0xf]
    %v63 = vld [vmem:[#allocation4 + $0x8] sm:$0xf]
    %v64 = vld [vmem:[#allocation4 + $0xc] sm:$0xf]
    %v65 = vld [vmem:[#allocation4 + $0x10] sm:$0xf]
    %v66 = vld [vmem:[#allocation4 + $0x14] sm:$0xf]
    %v67 = vld [vmem:[#allocation4 + $0x18] sm:$0xf]
    %v68 = vld [vmem:[#allocation4 + $0x1c] sm:$0xf]
    %v69 = vld [vmem:[#allocation4 + $0x20] sm:$0xf]
    %v70 = vld [vmem:[#allocation4 + $0x24] sm:$0xf]
    %v71 = vld [vmem:[#allocation4 + $0x28] sm:$0xf]
    %v72 = vld [vmem:[#allocation4 + $0x2c] sm:$0xf]
    %v73 = vld [vmem:[#allocation4 + $0x30] sm:$0xf]
    %v74 = vld [vmem:[#allocation4 + $0x34] sm:$0xf]
    %v75 = vld [vmem:[#allocation4 + $0x38] sm:$0xf]
    %v76 = vld [vmem:[#allocation4 + $0x3c] sm:$0xf]
    %v77 = vld [vmem:[%s2] sm:$0x1]
    %v79 = vlaneseq
    %v80 = vshrl.u32 %v79, 7
    %v81 = vsub.s32 0, %v80
    %v82 = vrot.slane %v77, %v81
    %v100 = vunpack.c.l.b16 %v61
    %v101 = vunpack.c.l.b16 %v62
    %v102 = vunpack.c.l.b16 %v63
    %v103 = vunpack.c.l.b16 %v64
    %v104 = vunpack.c.l.b16 %v65
    %v105 = vunpack.c.l.b16 %v66
    %v106 = vunpack.c.l.b16 %v67
    %v107 = vunpack.c.l.b16 %v68
    %v108 = vunpack.c.l.b16 %v69
    %v109 = vunpack.c.l.b16 %v70
    %v110 = vunpack.c.l.b16 %v71
    %v111 = vunpack.c.l.b16 %v72
    %v112 = vunpack.c.l.b16 %v73
    %v113 = vunpack.c.l.b16 %v74
    %v114 = vunpack.c.l.b16 %v75
    %v115 = vunpack.c.l.b16 %v76
    %v116 = vpack.c.b16 %v101, %v100
    %v117 = vpack.c.b16 %v103, %v102
    %v118 = vpack.c.b16 %v105, %v104
    %v119 = vpack.c.b16 %v107, %v106
    %v120 = vpack.c.b16 %v109, %v108
    %v121 = vpack.c.b16 %v111, %v110
    %v122 = vpack.c.b16 %v113, %v112
    %v123 = vpack.c.b16 %v115, %v114
    %132 = vmatprep.subr.bf16.mxu0 0
    %133 = vmatpush1.bf16.msra.mxu0 %v123
    %134 = vmatprep.subr.bf16.mxu0 0
    %135 = vmatpush1.bf16.msra.mxu0 %v122
    %136 = vmatprep.subr.bf16.mxu0 0
    %137 = vmatpush1.bf16.msra.mxu0 %v121
    %138 = vmatprep.subr.bf16.mxu0 0
    %139 = vmatpush1.bf16.msra.mxu0 %v120
    %140 = vmatprep.subr.bf16.mxu0 0
    %141 = vmatpush1.bf16.msra.mxu0 %v119
    %142 = vmatprep.subr.bf16.mxu0 0
    %143 = vmatpush1.bf16.msra.mxu0 %v118
    %144 = vmatprep.subr.bf16.mxu0 0
    %145 = vmatpush1.bf16.msra.mxu0 %v117
    %146 = vmatprep.subr.bf16.mxu0 0
    %147 = vmatpush1.bf16.msra.mxu0 %v116
    %148 = vmatprep.subr.bf16.mxu0 0
    %149 = vmatpush2.bf16.msra.mxu0 0
    %150 = vmatprep.subr.bf16.mxu0 0
    %151 = vmatpush2.bf16.msra.mxu0 0
    %152 = vmatprep.subr.bf16.mxu0 0
    %153 = vmatpush2.bf16.msra.mxu0 0
    %154 = vmatprep.subr.bf16.mxu0 0
    %155 = vmatpush2.bf16.msra.mxu0 0
    %156 = vmatprep.subr.bf16.mxu0 0
    %157 = vmatpush2.bf16.msra.mxu0 0
    %158 = vmatprep.subr.bf16.mxu0 0
    %159 = vmatpush2.bf16.msra.mxu0 0
    %160 = vmatprep.subr.bf16.mxu0 0
    %161 = vmatpush2.bf16.msra.mxu0 0
    %162 = vmatprep.subr.bf16.mxu0 0
    %163 = vmatpush2.bf16.msra.mxu0 0
    %164 = vmatprep.mubr.bf16.mxu0 0
    %165 = vmatmul.mubr.bf16.gmra.mxu0 %v60
    %v166 = vpop.f32.mrf.mxu0
    %v167 = vadd.f32 %v82, %v166
    %v168 = vpop.f32.mrf.mxu0
    %v169 = vpop.f32.mrf.mxu0
    %v170 = vpop.f32.mrf.mxu0
    %171 = vdwg.mxu0
    %v172 = vmax.f32 %v167, 0.0
    %v173 = vpack.c.bf16 %v172, %v172
    %v174 = vld [vmem:[#allocation6] sm:$0xf]
    %v175 = vld [vmem:[#allocation6 + $0x4] sm:$0xf]
    %v176 = vld [vmem:[#allocation6 + $0x8] sm:$0xf]
    %v177 = vld [vmem:[#allocation6 + $0xc] sm:$0xf]
    %v178 = vld [vmem:[#allocation6 + $0x10] sm:$0xf]
    %v179 = vld [vmem:[#allocation6 + $0x14] sm:$0xf]
    %v180 = vld [vmem:[#allocation6 + $0x18] sm:$0xf]
    %v181 = vld [vmem:[#allocation6 + $0x1c] sm:$0xf]
    %v182 = vld [vmem:[#allocation6 + $0x20] sm:$0xf]
    %v183 = vld [vmem:[#allocation6 + $0x24] sm:$0xf]
    %v184 = vld [vmem:[#allocation6 + $0x28] sm:$0xf]
    %v185 = vld [vmem:[#allocation6 + $0x2c] sm:$0xf]
    %v186 = vld [vmem:[#allocation6 + $0x30] sm:$0xf]
    %v187 = vld [vmem:[#allocation6 + $0x34] sm:$0xf]
    %v188 = vld [vmem:[#allocation6 + $0x38] sm:$0xf]
    %v189 = vld [vmem:[#allocation6 + $0x3c] sm:$0xf]
    %v206 = vunpack.c.l.b16 %v174
    %v207 = vunpack.c.l.b16 %v175
    %v208 = vunpack.c.l.b16 %v176
    %v209 = vunpack.c.l.b16 %v177
    %v210 = vunpack.c.l.b16 %v178
    %v211 = vunpack.c.l.b16 %v179
    %v212 = vunpack.c.l.b16 %v180
    %v213 = vunpack.c.l.b16 %v181
    %v214 = vunpack.c.l.b16 %v182
    %v215 = vunpack.c.l.b16 %v183
    %v216 = vunpack.c.l.b16 %v184
    %v217 = vunpack.c.l.b16 %v185
    %v218 = vunpack.c.l.b16 %v186
    %v219 = vunpack.c.l.b16 %v187
    %v220 = vunpack.c.l.b16 %v188
    %v221 = vunpack.c.l.b16 %v189
    %v222 = vpack.c.b16 %v207, %v206
    %v223 = vpack.c.b16 %v209, %v208
    %v224 = vpack.c.b16 %v211, %v210
    %v225 = vpack.c.b16 %v213, %v212
    %v226 = vpack.c.b16 %v215, %v214
    %v227 = vpack.c.b16 %v217, %v216
    %v228 = vpack.c.b16 %v219, %v218
    %v229 = vpack.c.b16 %v221, %v220
    %238 = vmatprep.subr.bf16.mxu0 0
    %239 = vmatpush1.bf16.msra.mxu0 %v229
    %240 = vmatprep.subr.bf16.mxu0 0
    %241 = vmatpush1.bf16.msra.mxu0 %v228
    %242 = vmatprep.subr.bf16.mxu0 0
    %243 = vmatpush1.bf16.msra.mxu0 %v227
    %244 = vmatprep.subr.bf16.mxu0 0
    %245 = vmatpush1.bf16.msra.mxu0 %v226
    %246 = vmatprep.subr.bf16.mxu0 0
    %247 = vmatpush1.bf16.msra.mxu0 %v225
    %248 = vmatprep.subr.bf16.mxu0 0
    %249 = vmatpush1.bf16.msra.mxu0 %v224
    %250 = vmatprep.subr.bf16.mxu0 0
    %251 = vmatpush1.bf16.msra.mxu0 %v223
    %252 = vmatprep.subr.bf16.mxu0 0
    %253 = vmatpush1.bf16.msra.mxu0 %v222
    %254 = vmatprep.subr.bf16.mxu0 0
    %255 = vmatpush2.bf16.msra.mxu0 0
    %256 = vmatprep.subr.bf16.mxu0 0
    %257 = vmatpush2.bf16.msra.mxu0 0
    %258 = vmatprep.subr.bf16.mxu0 0
    %259 = vmatpush2.bf16.msra.mxu0 0
    %260 = vmatprep.subr.bf16.mxu0 0
    %261 = vmatpush2.bf16.msra.mxu0 0
    %262 = vmatprep.subr.bf16.mxu0 0
    %263 = vmatpush2.bf16.msra.mxu0 0
    %264 = vmatprep.subr.bf16.mxu0 0
    %265 = vmatpush2.bf16.msra.mxu0 0
    %266 = vmatprep.subr.bf16.mxu0 0
    %267 = vmatpush2.bf16.msra.mxu0 0
    %268 = vmatprep.subr.bf16.mxu0 0
    %269 = vmatpush2.bf16.msra.mxu0 0
    %270 = vmatprep.mubr.bf16.mxu0 0
    %271 = vmatmul.mubr.bf16.gmra.mxu0 %v173
    %v272 = vpop.f32.mrf.mxu0
    %v273 = vadd.f32 0.0, %v272
    %v274 = vpop.f32.mrf.mxu0
    %v275 = vpop.f32.mrf.mxu0
    %v276 = vpop.f32.mrf.mxu0
    %277 = vdwg.mxu0
    %v278 = vld [vmem:[%s4] sm:$0x1]
    %v280 = vlaneseq
    %v281 = vshrl.u32 %v280, 7
    %v282 = vsub.s32 0, %v281
    %v283 = vrot.slane %v278, %v282
    %v285 = vadd.f32 %v273, %v283
    %vm286 = vcmask 15360
    %287 = vst.msk [vmem:[%s5] sm:$0xff] %vm286, %v285
    // Predicated region
    $region34: #{tpu_custom_call.1} parent=1 // pred_check
      _
    $region35: #{tpu_custom_call.1} parent=1 // pred_check_branch
      %289 = sbr.rel (0) target = $region37
    $region36: #{tpu_custom_call.1} parent=1 // pred_region
      _
    $region37: #{tpu_custom_call.1} parent=1 // pred_fallthru
      _
    // Predicated region
    $region38: #{tpu_custom_call.1} parent=1 // pred_check
      _
    $region39: #{tpu_custom_call.1} parent=1 // pred_check_branch
      %291 = sbr.rel (0) target = $region41
    $region40: #{tpu_custom_call.1} parent=1 // pred_region
      _
    $region41: #{tpu_custom_call.1} parent=1 // pred_fallthru
      _
    %292 = vsyncpa [#allocation3], 1
    %293 = vsyncpa [#allocation5], 1

</llo_original>
